<compile_context>
chip_gen: v7x
topology: tpu7x:2x2x1
jax: 0.10.0
libtpu: 0.0.40
codegen_flags: <defaults>
</compile_context>

<pallas_src>
import math

import jax
import jax.numpy as jnp
from jax.experimental import pallas as pl
from jax.experimental.pallas import tpu as pltpu


def _anchored_kernel(x_ref, r_ref, w_ref, s_ref, o_ref):
    """One (batch-tile, ensemble-member) grid step.

    x_ref: (TB, 1, M, I)   r_ref: (E, I)   w_ref: (I, O)   s_ref: (E, O)
    o_ref: (TB, 1, M, O)
    """
    e = pl.program_id(1)
    tb, _, m, i = x_ref.shape
    o = o_ref.shape[-1]

    r_row = r_ref[pl.ds(e, 1), :]            # (1, I)  resident, row picked in-kernel
    s_row = s_ref[pl.ds(e, 1), :]            # (1, O)

    if m == 1:
        x2 = x_ref[:, 0, 0, :]               # (TB, I)  direct strided load
    else:
        x2 = x_ref[...].reshape(tb * m, i)   # (TB*M, I) free when M % 8 == 0

    xr = x2 * r_row                          # promoted dtype (no downcast to w dtype)
    y = jnp.dot(xr, w_ref[...], preferred_element_type=jnp.float32)   # MXU
    y = (y * s_row).astype(o_ref.dtype)

    if m == 1:
        o_ref[:, 0, 0, :] = y
    else:
        o_ref[...] = y.reshape(tb, 1, m, o)


def _round_up(n, m):
    return ((n + m - 1) // m) * m


def _pick_batch_tile(B, M, I, O, itemsize, vmem_budget=16 * 1024 * 1024,
                     target_rows=512):
    """Largest divisor of B whose double-buffered (x + out) blocks fit the
    budget; stop growing once a block already carries >= target_rows rows."""
    best = 1
    for tb in range(1, B + 1):
        if B % tb:
            continue
        if 2 * tb * M * (I + O) * itemsize > vmem_budget:
            break
        best = tb
        if tb * M >= target_rows:
            break
    return best


@jax.jit
def anchored_batch_linear(x, r, weight, s):
    """x: (B, E, ..., I); r: (E, I); weight: (I, O); s: (E, O) -> (B, E, ..., O)."""
    B, E = x.shape[0], x.shape[1]
    mid = x.shape[2:-1]
    I = x.shape[-1]
    O = weight.shape[-1]
    M = int(math.prod(mid))
    out_dtype = jnp.result_type(x.dtype, r.dtype, weight.dtype, s.dtype)

    # Free reshape: merge only the (contiguous) mid dims; B and E stay in place,
    # so there is no HBM transpose pass.
    x4 = x.reshape(B, E, M, I)

    # Lane-dense output: pad O to a multiple of 128 (weight/s are tiny).
    O_pad = _round_up(O, 128)
    if O_pad != O:
        weight_p = jnp.pad(weight, ((0, 0), (0, O_pad - O)))
        s_p = jnp.pad(s, ((0, 0), (0, O_pad - O)))
    else:
        weight_p, s_p = weight, s

    itemsize = max(jnp.dtype(x.dtype).itemsize, jnp.dtype(out_dtype).itemsize)
    TB = _pick_batch_tile(B, M, I, O_pad, itemsize)
    grid = (B // TB, E)

    flops = 2 * B * M * E * I * O_pad
    bytes_accessed = int(
        x4.size * jnp.dtype(x4.dtype).itemsize
        + B * E * M * O_pad * jnp.dtype(out_dtype).itemsize
        + weight_p.size * jnp.dtype(weight_p.dtype).itemsize
        + r.size * jnp.dtype(r.dtype).itemsize
        + s_p.size * jnp.dtype(s_p.dtype).itemsize
    )

    out4 = pl.pallas_call(
        _anchored_kernel,
        out_shape=jax.ShapeDtypeStruct((B, E, M, O_pad), out_dtype),
        grid=grid,
        in_specs=[
            # x: one (TB, 1, M, I) slab per (batch-tile, ensemble member).
            pl.BlockSpec((TB, 1, M, I), lambda b, e: (b, e, 0, 0)),
            # r, s: fully resident (constant index_map); rows selected in-kernel.
            pl.BlockSpec((E, I), lambda b, e: (0, 0)),
            # weight: resident and single-buffered (never re-fetched).
            pl.BlockSpec((I, O_pad), lambda b, e: (0, 0),
                         pipeline_mode=pl.Buffered(1)),
            pl.BlockSpec((E, O_pad), lambda b, e: (0, 0)),
        ],
        out_specs=pl.BlockSpec((TB, 1, M, O_pad), lambda b, e: (b, e, 0, 0)),
        compiler_params=pltpu.CompilerParams(
            dimension_semantics=("parallel", "parallel"),
            vmem_limit_bytes=48 * 1024 * 1024,
        ),
        cost_estimate=pl.CostEstimate(
            flops=flops, transcendentals=0, bytes_accessed=bytes_accessed),
    )(x4, r, weight_p, s_p)

    out = out4[..., :O] if O_pad != O else out4
    return out.reshape((B, E) + mid + (O,))


def init_params(key, ensemble_size, in_features, out_features, dtype=jnp.float32):
    # reset_parameters(): fan = fan_in of weight.T (shape (O, I)) -> in_features
    # gain = sqrt(2) (relu); std = gain / sqrt(fan)
    # weight ~ N(0, std); r ~ N(1, std); s ~ N(1, std)
    std = math.sqrt(2.0) / math.sqrt(in_features)
    kw, kr, ks = jax.random.split(key, 3)
    weight = std * jax.random.normal(kw, (in_features, out_features), dtype)
    r = 1.0 + std * jax.random.normal(kr, (ensemble_size, in_features), dtype)
    s = 1.0 + std * jax.random.normal(ks, (ensemble_size, out_features), dtype)
    return weight, r, s


if __name__ == "__main__":
    key = jax.random.PRNGKey(0)

    def run_case(case_key, x_shape, out_features):
        E, I = x_shape[1], x_shape[-1]
        kx, kp = jax.random.split(case_key)
        x = jax.random.normal(kx, x_shape, jnp.float32)
        weight, r, s = init_params(kp, E, I, out_features)

        out = jax.block_until_ready(anchored_batch_linear(x, r, weight, s))

        # pure-JAX reference (HIGHEST precision so the check is not limited by
        # the reference's own matmul precision on TPU).
        r_b = r.reshape((1, E) + (1,) * (x.ndim - 3) + (I,))
        s_b = s.reshape((1, E) + (1,) * (x.ndim - 3) + (out_features,))
        ref = jnp.einsum("...i,io->...o", x * r_b, weight,
                         precision=jax.lax.Precision.HIGHEST) * s_b

        assert out.shape == x_shape[:-1] + (out_features,)
        assert jnp.allclose(out, ref, atol=2e-2, rtol=2e-2), float(
            jnp.max(jnp.abs(out - ref)))
        return out

    k1, k2 = jax.random.split(key)
    # (B, E, seq, I) with a mid dim; lane-aligned I/O (clean fast path).
    run_case(k1, (2, 4, 8, 128), 256)
    # plain (B, E, I) MLP case with unaligned I/O (exercises the O-padding path).
    run_case(k2, (4, 4, 32), 64)

    print("KERNEL_OK")
</pallas_src>

<mosaic_0001>
module attributes {stable_mosaic.version = 11 : i64} {
  func.func @_anchored_kernel(%arg0: i32, %arg1: i32, %arg2: memref<2x1x8x128xf32, #tpu.memory_space<vmem>>, %arg3: memref<4x128xf32, #tpu.memory_space<vmem>>, %arg4: memref<128x256xf32, #tpu.memory_space<vmem>>, %arg5: memref<4x256xf32, #tpu.memory_space<vmem>>, %arg6: memref<2x1x8x256xf32, #tpu.memory_space<vmem>>) attributes {dimension_semantics = [#tpu.dimension_semantics<parallel>, #tpu.dimension_semantics<parallel>], iteration_bounds = array<i64: 1, 4>, scalar_prefetch = 0 : i64, scratch_operands = 0 : i64, tpu.core_type = #tpu.core_type<tc>, window_params = [{transform_indices = @transform_0, window_bounds = array<i64: 2, 1, 8, 128>}, {pipeline_mode = #tpu.pipeline_mode<synchronous>, transform_indices = @transform_1, window_bounds = array<i64: 4, 128>}, {pipeline_mode = #tpu.pipeline_mode<synchronous>, transform_indices = @transform_2, window_bounds = array<i64: 128, 256>}, {pipeline_mode = #tpu.pipeline_mode<synchronous>, transform_indices = @transform_3, window_bounds = array<i64: 4, 256>}, {transform_indices = @transform_4, window_bounds = array<i64: 2, 1, 8, 256>}]} {
    %0 = arith.index_cast %arg1 : i32 to index
    %c0 = arith.constant 0 : index
    %1 = vector.load %arg3[%0, %c0] : memref<4x128xf32, #tpu.memory_space<vmem>>, vector<1x128xf32>
    %2 = arith.index_cast %arg1 : i32 to index
    %c0_0 = arith.constant 0 : index
    %3 = vector.load %arg5[%2, %c0_0] : memref<4x256xf32, #tpu.memory_space<vmem>>, vector<1x256xf32>
    %c0_1 = arith.constant 0 : index
    %c0_2 = arith.constant 0 : index
    %c0_3 = arith.constant 0 : index
    %c0_4 = arith.constant 0 : index
    %4 = vector.load %arg2[%c0_1, %c0_2, %c0_3, %c0_4] : memref<2x1x8x128xf32, #tpu.memory_space<vmem>>, vector<2x1x8x128xf32>
    %5 = vector.shape_cast %4 : vector<2x1x8x128xf32> to vector<16x128xf32>
    %6 = vector.broadcast %1 : vector<1x128xf32> to vector<16x128xf32>
    %7 = arith.mulf %5, %6 : vector<16x128xf32>
    %c0_5 = arith.constant 0 : index
    %c0_6 = arith.constant 0 : index
    %8 = vector.load %arg4[%c0_5, %c0_6] : memref<128x256xf32, #tpu.memory_space<vmem>>, vector<128x256xf32>
    %cst = arith.constant dense<0.000000e+00> : vector<16x256xf32>
    %9 = tpu.matmul %7, %8, %cst {dimension_numbers = #tpu.dot_dimension_numbers<[1], [0], [0], [1], [0, 0, 1, 1], [], []>} : vector<16x128xf32>, vector<128x256xf32>, vector<16x256xf32> -> vector<16x256xf32>
    %10 = vector.broadcast %3 : vector<1x256xf32> to vector<16x256xf32>
    %11 = arith.mulf %9, %10 : vector<16x256xf32>
    %12 = vector.shape_cast %11 : vector<16x256xf32> to vector<2x1x8x256xf32>
    %c0_7 = arith.constant 0 : index
    %c0_8 = arith.constant 0 : index
    %c0_9 = arith.constant 0 : index
    %c0_10 = arith.constant 0 : index
    %13 = vector.load %arg6[%c0_7, %c0_8, %c0_9, %c0_10] : memref<2x1x8x256xf32, #tpu.memory_space<vmem>>, vector<2x1x8x256xf32>
    tpu.vector_store %arg6[%c0_7, %c0_8, %c0_9, %c0_10], %12 {strides = array<i32>} : memref<2x1x8x256xf32, #tpu.memory_space<vmem>>, vector<2x1x8x256xf32>,
    return
  }
  func.func @transform_0(%arg0: i32, %arg1: i32) -> (i32, i32, i32, i32) {
    %c0_i32 = arith.constant 0 : i32
    %c0_i32_0 = arith.constant 0 : i32
    %c0_i32_1 = arith.constant 0 : i32
    return %arg0, %arg1, %c0_i32, %c0_i32_0 : i32, i32, i32, i32
  }
  func.func @transform_1(%arg0: i32, %arg1: i32) -> (i32, i32) {
    %c0_i32 = arith.constant 0 : i32
    %c0_i32_0 = arith.constant 0 : i32
    %c0_i32_1 = arith.constant 0 : i32
    return %c0_i32, %c0_i32_0 : i32, i32
  }
  func.func @transform_2(%arg0: i32, %arg1: i32) -> (i32, i32) {
    %c0_i32 = arith.constant 0 : i32
    %c0_i32_0 = arith.constant 0 : i32
    %c0_i32_1 = arith.constant 0 : i32
    return %c0_i32, %c0_i32_0 : i32, i32
  }
  func.func @transform_3(%arg0: i32, %arg1: i32) -> (i32, i32) {
    %c0_i32 = arith.constant 0 : i32
    %c0_i32_0 = arith.constant 0 : i32
    %c0_i32_1 = arith.constant 0 : i32
    return %c0_i32, %c0_i32_0 : i32, i32
  }
  func.func @transform_4(%arg0: i32, %arg1: i32) -> (i32, i32, i32, i32) {
    %c0_i32 = arith.constant 0 : i32
    %c0_i32_0 = arith.constant 0 : i32
    %c0_i32_1 = arith.constant 0 : i32
    return %arg0, %arg1, %c0_i32, %c0_i32_0 : i32, i32, i32, i32
  }
}

</mosaic_0001>

<llo_original>
// kernel: anchored_batch_linear.1
$region0: #{anchored_batch_linear.1}
  #allocation0 [shape = 'u32[]', space=smem, size = 0x4, offset = 0x4, fixed_abs, tag = 'smem constant byte address 0x4 - core index']
  #allocation1 [shape = 'u32[144,128]{1,0:T(1,128)}', space=vmem, size = 0x12000, scoped, tag = 'internal scratch']
  %s0 = inlined_call_operand.hbm [shape: f32[2,4,8,128], index: 0, kind: input, shape index: {}]
  %s1 = inlined_call_operand.hbm [shape: f32[4,128], index: 1, kind: input, shape index: {}]
  %s2 = inlined_call_operand.hbm [shape: f32[128,256], index: 2, kind: input, shape index: {}]
  %s3 = inlined_call_operand.vmem [shape: f32[4,256], index: 3, kind: input, shape index: {}]
  %s4 = inlined_call_operand.hbm [shape: f32[2,4,8,256], index: 4, kind: output, shape index: {}]
  %s5 = sld [smem:[#allocation0]]
  $region61: #{anchored_batch_linear.1} parent=0
    _
  %s7 = ssub.s32 1, %s5
  %s8 = scalar_select 0, %s7, %s5
  $region1: #{anchored_batch_linear.1} parent=0
    #allocation2 [shape = 'u8[16384]{0}', space=vmem, size = 0x4000, scoped, tag = 'input window, operand 0']
    #allocation3 [shape = 's32[2]{0}', space=sflag, size = 0x8, scoped, tag = 'scoped memory for anchored_batch_linear.1']
    #allocation4 [shape = 's32[2]{0}', space=sflag, size = 0x8, scoped, tag = 'scoped memory for anchored_batch_linear.1']
    #allocation5 [shape = 'u8[2048]{0}', space=vmem, size = 0x800, scoped, tag = 'input window, operand 1, single buffered']
    #allocation6 [shape = 's32[1]{0}', space=sflag, size = 0x4, scoped, tag = 'scoped memory for anchored_batch_linear.1']
    #allocation7 [shape = 'u8[131072]{0}', space=vmem, size = 0x20000, scoped, tag = 'input window, operand 2, single buffered']
    #allocation8 [shape = 'u8[32768]{0}', space=vmem, size = 0x8000, scoped, tag = 'output window, operand 0']
    %9 = vsyncpa [#allocation3], 0
    %s10 = scalar_lea.sflag [#allocation3], 1
    %11 = vsyncpa %s10, 0
    %12 = vsyncpa [#allocation6], 0
    %13 = vsyncpa [#allocation4], 0
    %s14 = scalar_lea.sflag [#allocation4], 1
    %15 = vsyncpa %s14, 0
    loop: start=0, step=1, limit=6
    $region2: #{anchored_batch_linear.1} parent=1 // loop_pre_header
      _
    $region3: #{anchored_batch_linear.1} parent=1 // loop_header
      %s17 = sphi 0, %s21
      %p18 = scmp.ge.s32.totalorder %s17, 6
      %s24 = sphi 0, %s36
      %s25 = sphi 0, %s32
      %s26 = sphi 0, %s24
      %s27 = sphi 0, %s25
      %s28 = sphi 0, %s26
      %s29 = sphi 0, %s27
      %s41 = sphi 0, %s43
      %s44 = sphi 0, %s41
      %s45 = sphi 0, %s44
      %s61 = sphi 0, %s45
      %s65 = sphi 0, %s65
      %s67 = sphi 0, %s65
      %s68 = sphi 0, %s67
      %s82 = sphi 0, %s68
      %s86 = sphi 0, %s86
      %s88 = sphi 0, %s86
      %s89 = sphi 0, %s88
      %s103 = sphi 0, %s89
      %s107 = sphi 0, %s107
      %s109 = sphi 0, %s107
      %s110 = sphi 0, %s109
      %s124 = sphi 0, %s110
      %s132 = sphi 0, %s134
      %s135 = sphi 0, %s132
      %s136 = sphi 0, %s135
      %s152 = sphi 0, %s136
    $region4: #{anchored_batch_linear.1} parent=1 // loop_header_branch
      %20 = sbr.rel (%p18) target = $region8
    $region5: #{anchored_batch_linear.1} parent=1 // loop_body
      %s22 = ssub.s32 %s17, 1
      %s23 = ssub.s32 %s17, 2
      %s30 = sadd.s32 1, %s25
      %p31 = scmp.ge.s32.totalorder %s30, 4
      %s32 = scalar_select %p31, 0, %s30
      %s33 = sadd.s32 1, %s24
      %s34 = scalar_select %p31, %s33, %s24
      %p35 = scmp.ge.s32.totalorder %s34, 1
      %s36 = scalar_select %p35, 0, %s34
      %s37 = ssub.s32 %s24, %s36
      %s38 = ssub.s32 %s25, %s32
      %s39 = sor.u32 %s37, %s38
      %p40 = scmp.eq.s32.totalorder %s39, 0
      %s42 = sadd.s32 %s41, 1
      %s43 = scalar_select %p40, %s41, %s42
      %p46 = pneg %p40
      %p47 = scmp.eq.s32.totalorder %s17, 3
      %p48 = por %p46, %p47
      %p49 = scmp.ne.s32.totalorder %s41, %s44
      %p50 = scmp.eq.s32.totalorder %s17, 0
      %p51 = por %p49, %p50
      %p52 = scmp.ne.s32.totalorder %s41, %s44
      %p53 = scmp.eq.s32.totalorder %s22, 3
      %p54 = por %p52, %p53
      %p55 = scmp.ne.s32.totalorder %s44, %s45
      %p56 = scmp.eq.s32.totalorder %s22, 0
      %p57 = por %p55, %p56
      %p58 = scmp.ne.s32.totalorder %s44, %s45
      %p59 = scmp.eq.s32.totalorder %s23, 3
      %p60 = por %p58, %p59
      %p62 = scmp.ne.s32.totalorder %s45, %s61
      %p63 = scmp.eq.s32.totalorder %s23, 0
      %p64 = por %p62, %p63
      %s66 = sadd.s32 %s65, 1
      %p69 = scmp.eq.s32.totalorder %s17, 3
      %p70 = scmp.ne.s32.totalorder %s65, %s67
      %p71 = scmp.eq.s32.totalorder %s17, 0
      %p72 = por %p70, %p71
      %p73 = scmp.ne.s32.totalorder %s65, %s67
      %p74 = scmp.eq.s32.totalorder %s22, 3
      %p75 = por %p73, %p74
      %p76 = scmp.ne.s32.totalorder %s67, %s68
      %p77 = scmp.eq.s32.totalorder %s22, 0
      %p78 = por %p76, %p77
      %p79 = scmp.ne.s32.totalorder %s67, %s68
      %p80 = scmp.eq.s32.totalorder %s23, 3
      %p81 = por %p79, %p80
      %p83 = scmp.ne.s32.totalorder %s68, %s82
      %p84 = scmp.eq.s32.totalorder %s23, 0
      %p85 = por %p83, %p84
      %s87 = sadd.s32 %s86, 1
      %p90 = scmp.eq.s32.totalorder %s17, 3
      %p91 = scmp.ne.s32.totalorder %s86, %s88
      %p92 = scmp.eq.s32.totalorder %s17, 0
      %p93 = por %p91, %p92
      %p94 = scmp.ne.s32.totalorder %s86, %s88
      %p95 = scmp.eq.s32.totalorder %s22, 3
      %p96 = por %p94, %p95
      %p97 = scmp.ne.s32.totalorder %s88, %s89
      %p98 = scmp.eq.s32.totalorder %s22, 0
      %p99 = por %p97, %p98
      %p100 = scmp.ne.s32.totalorder %s88, %s89
      %p101 = scmp.eq.s32.totalorder %s23, 3
      %p102 = por %p100, %p101
      %p104 = scmp.ne.s32.totalorder %s89, %s103
      %p105 = scmp.eq.s32.totalorder %s23, 0
      %p106 = por %p104, %p105
      %s108 = sadd.s32 %s107, 1
      %p111 = scmp.eq.s32.totalorder %s17, 3
      %p112 = scmp.ne.s32.totalorder %s107, %s109
      %p113 = scmp.eq.s32.totalorder %s17, 0
      %p114 = por %p112, %p113
      %p115 = scmp.ne.s32.totalorder %s107, %s109
      %p116 = scmp.eq.s32.totalorder %s22, 3
      %p117 = por %p115, %p116
      %p118 = scmp.ne.s32.totalorder %s109, %s110
      %p119 = scmp.eq.s32.totalorder %s22, 0
      %p120 = por %p118, %p119
      %p121 = scmp.ne.s32.totalorder %s109, %s110
      %p122 = scmp.eq.s32.totalorder %s23, 3
      %p123 = por %p121, %p122
      %p125 = scmp.ne.s32.totalorder %s110, %s124
      %p126 = scmp.eq.s32.totalorder %s23, 0
      %p127 = por %p125, %p126
      %s128 = ssub.s32 %s24, %s36
      %s129 = ssub.s32 %s25, %s32
      %s130 = sor.u32 %s128, %s129
      %p131 = scmp.eq.s32.totalorder %s130, 0
      %s133 = sadd.s32 %s132, 1
      %s134 = scalar_select %p131, %s132, %s133
      %p137 = pneg %p131
      %p138 = scmp.eq.s32.totalorder %s17, 3
      %p139 = por %p137, %p138
      %p140 = scmp.ne.s32.totalorder %s132, %s135
      %p141 = scmp.eq.s32.totalorder %s17, 0
      %p142 = por %p140, %p141
      %p143 = scmp.ne.s32.totalorder %s132, %s135
      %p144 = scmp.eq.s32.totalorder %s22, 3
      %p145 = por %p143, %p144
      %p146 = scmp.ne.s32.totalorder %s135, %s136
      %p147 = scmp.eq.s32.totalorder %s22, 0
      %p148 = por %p146, %p147
      %p149 = scmp.ne.s32.totalorder %s135, %s136
      %p150 = scmp.eq.s32.totalorder %s23, 3
      %p151 = por %p149, %p150
      %p153 = scmp.ne.s32.totalorder %s136, %s152
      %p154 = scmp.eq.s32.totalorder %s23, 0
      %p155 = por %p153, %p154
      %p156 = scmp.le.s32.totalorder 1, %s17
      %p157 = scmp.lt.s32.totalorder %s17, 5
      %p158 = pnand %p156, %p157
      %p159 = pneg %p158
      // Predicated region
      $region9: #{anchored_batch_linear.1} parent=5 // pred_check
        _
      $region10: #{anchored_batch_linear.1} parent=5 // pred_check_branch
        %161 = sbr.rel (%p158) target = $region12
      $region11: #{anchored_batch_linear.1} parent=5 // pred_region
        %s162 = ssub.s32 %s17, 1
        // Predicated region
        $region13: #{anchored_batch_linear.1} parent=11 // pred_check
          %p163 = pneg %p78
        $region14: #{anchored_batch_linear.1} parent=11 // pred_check_branch
          %165 = sbr.rel (%p163) target = $region16
        $region15: #{anchored_batch_linear.1} parent=11 // pred_region
          %s167 = ssub.s32 64, 64
          %168 = vsyncadd [#allocation6], %s167
          %s170 = sshll.u32 [#allocation5], 4
          %s171 = int_to_ptr.vmem [resolvable:$true] %s170
          %173 = dma.hbm_to_vmem [thread:$0]  %s1, 64, %s171, [#allocation6]
        $region16: #{anchored_batch_linear.1} parent=11 // pred_fallthru
          _
        // Predicated region
        $region17: #{anchored_batch_linear.1} parent=11 // pred_check
          %p174 = pneg %p99
        $region18: #{anchored_batch_linear.1} parent=11 // pred_check_branch
          %176 = sbr.rel (%p174) target = $region20
        $region19: #{anchored_batch_linear.1} parent=11 // pred_region
          %s178 = ssub.s32 4096, 4096
          %179 = vsyncadd [#allocation6], %s178
          %s180 = sshll.u32 [#allocation7], 4
          %s181 = int_to_ptr.vmem [resolvable:$true] %s180
          %186 = dma.hbm_to_vmem [thread:$0]  %s2, 4096, %s181, [#allocation6], 256, 256, 16
        $region20: #{anchored_batch_linear.1} parent=11 // pred_fallthru
          _
        // Predicated region
        $region21: #{anchored_batch_linear.1} parent=11 // pred_check
          %p187 = pneg %p120
        $region22: #{anchored_batch_linear.1} parent=11 // pred_check_branch
          %189 = sbr.rel (%p187) target = $region24
        $region23: #{anchored_batch_linear.1} parent=11 // pred_region
          _
        $region24: #{anchored_batch_linear.1} parent=11 // pred_fallthru
          _
      $region12: #{anchored_batch_linear.1} parent=5 // pred_fallthru
        _
      %p190 = scmp.lt.s32.totalorder %s17, 4
      // Predicated region
      $region25: #{anchored_batch_linear.1} parent=5 // pred_check
        %p191 = pneg %p190
      $region26: #{anchored_batch_linear.1} parent=5 // pred_check_branch
        %193 = sbr.rel (%p191) target = $region28
      $region27: #{anchored_batch_linear.1} parent=5 // pred_region
        // Predicated region
        $region29: #{anchored_batch_linear.1} parent=27 // pred_check
          %p194 = pneg %p51
        $region30: #{anchored_batch_linear.1} parent=27 // pred_check_branch
          %196 = sbr.rel (%p194) target = $region32
        $region31: #{anchored_batch_linear.1} parent=27 // pred_region
          %s197 = sand.u32 %s41, 1
          %s198 = scalar_lea.sflag [#allocation3], %s197
          %s199 = sand.u32 %s41, 1
          %s200 = smul.addr %s199, 16
          %s201 = scalar_lea.vmem [#allocation2], %s200
          %s202 = smul.u32 2, %s24
          %s204 = ssub.s32 256, 256
          %205 = vsyncadd %s198, %s204
          %s206 = smul.addr %s202, 4
          %s207 = sadd.s32 %s25, %s206
          %s208 = smul.addr %s207, 128
          %s209 = scalar_lea.hbm %s0, %s208
          %s210 = sshll.u32 %s201, 4
          %s211 = int_to_ptr.vmem [resolvable:$true] %s210
          %216 = dma.hbm_to_vmem [thread:$0]  %s209, 256, %s211, %s198, 512, 128, 8
        $region32: #{anchored_batch_linear.1} parent=27 // pred_fallthru
          _
      $region28: #{anchored_batch_linear.1} parent=5 // pred_fallthru
        _
      %p217 = scmp.le.s32.totalorder 1, %s17
      %p218 = scmp.lt.s32.totalorder %s17, 5
      %p219 = pnand %p217, %p218
      %p220 = pneg %p219
      // Predicated region
      $region33: #{anchored_batch_linear.1} parent=5 // pred_check
        _
      $region34: #{anchored_batch_linear.1} parent=5 // pred_check_branch
        %222 = sbr.rel (%p219) target = $region36
      $region35: #{anchored_batch_linear.1} parent=5 // pred_region
        %s223 = ssub.s32 %s17, 1
        %s224 = sand.u32 %s44, 1
        %s225 = scalar_lea.sflag [#allocation3], %s224
        %s226 = sand.u32 %s44, 1
        %s227 = smul.addr %s226, 16
        %s228 = scalar_lea.vmem [#allocation2], %s227
        // Predicated region
        $region37: #{anchored_batch_linear.1} parent=35 // pred_check
          %p229 = pneg %p57
        $region38: #{anchored_batch_linear.1} parent=35 // pred_check_branch
          %231 = sbr.rel (%p229) target = $region40
        $region39: #{anchored_batch_linear.1} parent=35 // pred_region
          %232 = dma.done %s225, 256
        $region40: #{anchored_batch_linear.1} parent=35 // pred_fallthru
          _
        // Predicated region
        $region41: #{anchored_batch_linear.1} parent=35 // pred_check
          %p233 = pneg %p78
        $region42: #{anchored_batch_linear.1} parent=35 // pred_check_branch
          %235 = sbr.rel (%p233) target = $region44
        $region43: #{anchored_batch_linear.1} parent=35 // pred_region
          %236 = dma.done [#allocation6], 64
        $region44: #{anchored_batch_linear.1} parent=35 // pred_fallthru
          _
        // Predicated region
        $region45: #{anchored_batch_linear.1} parent=35 // pred_check
          %p237 = pneg %p99
        $region46: #{anchored_batch_linear.1} parent=35 // pred_check_branch
          %239 = sbr.rel (%p237) target = $region48
        $region47: #{anchored_batch_linear.1} parent=35 // pred_region
          %240 = dma.done [#allocation6], 4096
        $region48: #{anchored_batch_linear.1} parent=35 // pred_fallthru
          _
        %s241 = sand.u32 %s44, 1
        %s242 = scalar_lea.sflag [#allocation3], %s241
        %s243 = sand.u32 %s44, 1
        %s244 = smul.addr %s243, 16
        %s245 = scalar_lea.vmem [#allocation2], %s244
        %p246 = pneg %p57
        %p247 = pneg %p54
        %p248 = pneg %p78
        %p249 = pneg %p75
        %p250 = pneg %p99
        %p251 = pneg %p96
        %p252 = pneg %p120
        %p253 = pneg %p117
        %p254 = pneg %p148
        %p255 = pneg %p145
        %s256 = sand.u32 %s135, 1
        %s257 = scalar_lea.sflag [#allocation4], %s256
        %s258 = sand.u32 %s135, 1
        %s259 = smul.addr %s258, 32
        %s260 = scalar_lea.vmem [#allocation8], %s259
        %s261 = smul.u32 2, %s26
        %s262 = smul.u32 2, %s26
        %s263 = scalar_lea.vmem [#allocation5], %s27
        %v264 = vld [vmem:[%s263] sm:$0x1]
        %s265 = sshra.s32 %s27, 2
        %s266 = sand.u32 %s27, 3
        %s267 = sshra.s32 %s27, 2
        %s268 = sand.u32 %s27, 3
        %s269 = smul.u32 %s265, 2
        %s270 = smul.u32 %s269, 4
        %s271 = sadd.s32 %s270, %s268
        %s272 = scalar_lea.vmem %s3, %s271
        %v273 = vld [vmem:[%s272] ss:$4 sm:$0x3]
        %v274 = vld [vmem:[%s228] sm:$0xff]
        %v275 = vld [vmem:[%s228 + $0x8] sm:$0xff]
        %v276 = vlaneseq
        %v277 = vshrl.u32 %v276, 7
        %v278 = vsub.s32 0, %v277
        %v279 = vrot.slane %v264, %v278
        %v280 = vmul.f32 %v274, %v279
        %v281 = vmul.f32 %v275, %v279
        %v282 = vld [vmem:[#allocation7] sm:$0xff]
        %v283 = vld [vmem:[#allocation7 + $0x8] sm:$0xff]
        %v284 = vld [vmem:[#allocation7 + $0x10] sm:$0xff]
        %v285 = vld [vmem:[#allocation7 + $0x18] sm:$0xff]
        %v286 = vld [vmem:[#allocation7 + $0x20] sm:$0xff]
        %v287 = vld [vmem:[#allocation7 + $0x28] sm:$0xff]
        %v288 = vld [vmem:[#allocation7 + $0x30] sm:$0xff]
        %v289 = vld [vmem:[#allocation7 + $0x38] sm:$0xff]
        %v290 = vld [vmem:[#allocation7 + $0x40] sm:$0xff]
        %v291 = vld [vmem:[#allocation7 + $0x48] sm:$0xff]
        %v292 = vld [vmem:[#allocation7 + $0x50] sm:$0xff]
        %v293 = vld [vmem:[#allocation7 + $0x58] sm:$0xff]
        %v294 = vld [vmem:[#allocation7 + $0x60] sm:$0xff]
        %v295 = vld [vmem:[#allocation7 + $0x68] sm:$0xff]
        %v296 = vld [vmem:[#allocation7 + $0x70] sm:$0xff]
        %v297 = vld [vmem:[#allocation7 + $0x78] sm:$0xff]
        %v298 = vld [vmem:[#allocation7 + $0x80] sm:$0xff]
        %v299 = vld [vmem:[#allocation7 + $0x88] sm:$0xff]
        %v300 = vld [vmem:[#allocation7 + $0x90] sm:$0xff]
        %v301 = vld [vmem:[#allocation7 + $0x98] sm:$0xff]
        %v302 = vld [vmem:[#allocation7 + $0xa0] sm:$0xff]
        %v303 = vld [vmem:[#allocation7 + $0xa8] sm:$0xff]
        %v304 = vld [vmem:[#allocation7 + $0xb0] sm:$0xff]
        %v305 = vld [vmem:[#allocation7 + $0xb8] sm:$0xff]
        %v306 = vld [vmem:[#allocation7 + $0xc0] sm:$0xff]
        %v307 = vld [vmem:[#allocation7 + $0xc8] sm:$0xff]
        %v308 = vld [vmem:[#allocation7 + $0xd0] sm:$0xff]
        %v309 = vld [vmem:[#allocation7 + $0xd8] sm:$0xff]
        %v310 = vld [vmem:[#allocation7 + $0xe0] sm:$0xff]
        %v311 = vld [vmem:[#allocation7 + $0xe8] sm:$0xff]
        %v312 = vld [vmem:[#allocation7 + $0xf0] sm:$0xff]
        %v313 = vld [vmem:[#allocation7 + $0xf8] sm:$0xff]
        %314 = vmatprep.subr.mxu0 %v283
        %315 = vmatpush1.msra.mxu0 %v282
        %316 = vmatprep.subr.mxu0 %v285
        %317 = vmatpush1.msra.mxu0 %v284
        %318 = vmatprep.subr.mxu0 %v287
        %319 = vmatpush1.msra.mxu0 %v286
        %320 = vmatprep.subr.mxu0 %v289
        %321 = vmatpush1.msra.mxu0 %v288
        %322 = vmatprep.subr.mxu0 %v291
        %323 = vmatpush1.msra.mxu0 %v290
        %324 = vmatprep.subr.mxu0 %v293
        %325 = vmatpush1.msra.mxu0 %v292
        %326 = vmatprep.subr.mxu0 %v295
        %327 = vmatpush1.msra.mxu0 %v294
        %328 = vmatprep.subr.mxu0 %v297
        %329 = vmatpush1.msra.mxu0 %v296
        %330 = vmatprep.subr.mxu0 %v299
        %331 = vmatpush1.msra.mxu0 %v298
        %332 = vmatprep.subr.mxu0 %v301
        %333 = vmatpush1.msra.mxu0 %v300
        %334 = vmatprep.subr.mxu0 %v303
        %335 = vmatpush1.msra.mxu0 %v302
        %336 = vmatprep.subr.mxu0 %v305
        %337 = vmatpush1.msra.mxu0 %v304
        %338 = vmatprep.subr.mxu0 %v307
        %339 = vmatpush1.msra.mxu0 %v306
        %340 = vmatprep.subr.mxu0 %v309
        %341 = vmatpush1.msra.mxu0 %v308
        %342 = vmatprep.subr.mxu0 %v311
        %343 = vmatpush1.msra.mxu0 %v310
        %344 = vmatprep.subr.mxu0 %v313
        %345 = vmatpush1.msra.mxu0 %v312
        %346 = vmatprep.subr.mxu0 0.0
        %347 = vmatpush1.msra.mxu0 0.0
        %348 = vmatprep.subr.mxu0 0.0
        %349 = vmatpush1.msra.mxu0 0.0
        %350 = vmatprep.subr.mxu0 0.0
        %351 = vmatpush1.msra.mxu0 0.0
        %352 = vmatprep.subr.mxu0 0.0
        %353 = vmatpush1.msra.mxu0 0.0
        %354 = vmatprep.subr.mxu0 0.0
        %355 = vmatpush1.msra.mxu0 0.0
        %356 = vmatprep.subr.mxu0 0.0
        %357 = vmatpush1.msra.mxu0 0.0
        %358 = vmatprep.subr.mxu0 0.0
        %359 = vmatpush1.msra.mxu0 0.0
        %360 = vmatprep.subr.mxu0 0.0
        %361 = vmatpush1.msra.mxu0 0.0
        %362 = vmatprep.subr.mxu0 0.0
        %363 = vmatpush1.msra.mxu0 0.0
        %364 = vmatprep.subr.mxu0 0.0
        %365 = vmatpush1.msra.mxu0 0.0
        %366 = vmatprep.subr.mxu0 0.0
        %367 = vmatpush1.msra.mxu0 0.0
        %368 = vmatprep.subr.mxu0 0.0
        %369 = vmatpush1.msra.mxu0 0.0
        %370 = vmatprep.subr.mxu0 0.0
        %371 = vmatpush1.msra.mxu0 0.0
        %372 = vmatprep.subr.mxu0 0.0
        %373 = vmatpush1.msra.mxu0 0.0
        %374 = vmatprep.subr.mxu0 0.0
        %375 = vmatpush1.msra.mxu0 0.0
        %376 = vmatprep.subr.mxu0 0.0
        %377 = vmatpush1.msra.mxu0 0.0
        %378 = vmatprep.mubr.f32.mxu0 0.0
        %379 = vmatmul.mubr.f32.gmra.mrb[0].mxu0 %v280
        %v380 = vpop.f32.mrb[0].mxu0
        %v381 = vadd.f32 0.0, %v380
        %v382 = vpop.f32.mrb[0].mxu0
        %v383 = vadd.f32 0.0, %v382
        %384 = vmatprep.mubr.f32.mxu0 0.0
        %385 = vmatmul.mubr.f32.gmra.mrb[0].mxu0 %v281
        %v386 = vpop.f32.mrb[0].mxu0
        %v387 = vadd.f32 0.0, %v386
        %v388 = vpop.f32.mrb[0].mxu0
        %v389 = vadd.f32 0.0, %v388
        %390 = vdwg.mxu0
        %v392 = vlaneseq
        %v393 = vshrl.u32 %v392, 7
        %v394 = vsub.s32 0, %v393
        %v395 = vrot.slane %v273, %v394
        %v396 = vlaneseq
        %v397 = vshrl.u32 %v396, 7
        %v398 = vsub.s32 1, %v397
        %v399 = vrot.slane %v273, %v398
        %v402 = vmul.f32 %v381, %v395
        %v403 = vmul.f32 %v383, %v399
        %v404 = vmul.f32 %v387, %v395
        %v405 = vmul.f32 %v389, %v399
        %406 = vst [vmem:[%s260] sm:$0xff] %v402
        %407 = vst [vmem:[%s260 + $0x8] sm:$0xff] %v403
        %408 = vst [vmem:[%s260 + $0x10] sm:$0xff] %v404
        %409 = vst [vmem:[%s260 + $0x18] sm:$0xff] %v405
        %s410 = sand.u32 %s135, 1
        %s411 = scalar_lea.sflag [#allocation4], %s410
        %s412 = sand.u32 %s135, 1
        %s413 = smul.addr %s412, 32
        %s414 = scalar_lea.vmem [#allocation8], %s413
        // Predicated region
        $region49: #{anchored_batch_linear.1} parent=35 // pred_check
          %p415 = pneg %p145
        $region50: #{anchored_batch_linear.1} parent=35 // pred_check_branch
          %417 = sbr.rel (%p415) target = $region52
        $region51: #{anchored_batch_linear.1} parent=35 // pred_region
          %s418 = smul.u32 2, %s26
          %s420 = ssub.s32 512, 512
          %421 = vsyncadd %s411, %s420
          %s422 = smul.addr %s27, 2
          %s423 = smul.addr %s418, 8
          %s424 = sadd.s32 %s422, %s423
          %s425 = smul.addr %s424, 128
          %s426 = scalar_lea.hbm %s4, %s425
          %s427 = sshll.u32 %s414, 4
          %s428 = int_to_ptr.vmem [resolvable:$true] %s427
          %433 = dma.vmem_to_hbm [thread:$0]  %s428, 512, %s426, %s411, 256, 1024, 16
        $region52: #{anchored_batch_linear.1} parent=35 // pred_fallthru
          _
      $region36: #{anchored_batch_linear.1} parent=5 // pred_fallthru
        _
      %p434 = scmp.le.s32.totalorder 2, %s17
      // Predicated region
      $region53: #{anchored_batch_linear.1} parent=5 // pred_check
        %p435 = pneg %p434
      $region54: #{anchored_batch_linear.1} parent=5 // pred_check_branch
        %437 = sbr.rel (%p435) target = $region56
      $region55: #{anchored_batch_linear.1} parent=5 // pred_region
        %s438 = ssub.s32 %s17, 2
        // Predicated region
        $region57: #{anchored_batch_linear.1} parent=55 // pred_check
          %p439 = pneg %p151
        $region58: #{anchored_batch_linear.1} parent=55 // pred_check_branch
          %441 = sbr.rel (%p439) target = $region60
        $region59: #{anchored_batch_linear.1} parent=55 // pred_region
          %s442 = sand.u32 %s136, 1
          %s443 = scalar_lea.sflag [#allocation4], %s442
          %s444 = sand.u32 %s136, 1
          %s445 = smul.addr %s444, 32
          %s446 = scalar_lea.vmem [#allocation8], %s445
          %447 = dma.done %s443, 512
        $region60: #{anchored_batch_linear.1} parent=55 // pred_fallthru
          _
      $region56: #{anchored_batch_linear.1} parent=5 // pred_fallthru
        _
    $region6: #{anchored_batch_linear.1} parent=1 // loop_footer
      %s21 = sadd.s32 1, %s17
    $region7: #{anchored_batch_linear.1} parent=1 // loop_footer_branch
      %16 = sbr.rel target = $region3
    $region8: #{anchored_batch_linear.1} parent=1 // loop_exit
      _
    %448 = vsyncpa [#allocation3], 1
    %s449 = scalar_lea.sflag [#allocation3], 1
    %450 = vsyncpa %s449, 1
    %451 = vsyncpa [#allocation6], 1
    %452 = vsyncpa [#allocation4], 1
    %s453 = scalar_lea.sflag [#allocation4], 1
    %454 = vsyncpa %s453, 1

</llo_original>
